<compile_context>
chip_gen: v7x
topology: tpu7x:2x2x1
jax: 0.10.0
libtpu: 0.0.40
codegen_flags: <defaults>
</compile_context>

<pallas_src>
import numpy as np
import jax
import jax.numpy as jnp
from jax.experimental import pallas as pl
from jax.experimental.pallas import tpu as pltpu

NSTAT = 8            # lane-padded stat columns: [tp, p_sum, onehot_cnt, ce_sum, 0, 0, 0, 0]
_LANES = 128
_TILE_QUANT = 4096   # keeps r_tile (= tile // 128) a multiple of 32 (int8 sublane tile)
_MAX_TILE = 262144   # 2048 sublane-rows x 128 lanes per class slab


def _stats_kernel(x_ref, y_ref, out_ref, tp_ref, ps_ref, cnt_ref, ce_ref):
    """x_ref: (1, C, R, 128) logits; y_ref: (1, 1, R, 128) int labels (pad = -1);
    out_ref: (1, 1, C, NSTAT) f32.  Scratch refs hold (8, 128) partial sums that are
    accumulated across the spatial grid axis; full reduction happens once at t==last."""
    t = pl.program_id(2)
    C = x_ref.shape[1]
    R = x_ref.shape[2]
    G = R // 8

    @pl.when(t == 0)
    def _():
        tp_ref[...] = jnp.zeros_like(tp_ref)
        ps_ref[...] = jnp.zeros_like(ps_ref)
        cnt_ref[...] = jnp.zeros_like(cnt_ref)
        ce_ref[...] = jnp.zeros_like(ce_ref)

    # Per-class (R, 128) slabs: sublane-dense, class-axis reductions are elementwise.
    xs = [x_ref[0, c].astype(jnp.float32) for c in range(C)]     # C x (R, 128)
    y = y_ref[0, 0].astype(jnp.int32)                            # (R, 128), pad == -1

    m = xs[0]
    for c in range(1, C):
        m = jnp.maximum(m, xs[c])
    es = [jnp.exp(xc - m) for xc in xs]
    denom = es[0]
    for c in range(1, C):
        denom = denom + es[c]
    # EUP approx reciprocal + one Newton step (~f32 exact), off the VALU slot.
    r = pl.reciprocal(denom, approx=True)
    inv = r * (2.0 - denom * r)

    def part(v):  # (R, 128) -> (8, 128): pure vreg adds, no cross-lane reduction
        return jnp.sum(v.reshape(G, 8, _LANES), axis=0)

    xt = None     # sum_c onehot_c * x_c  (CE target-logit term); 0 on padded pixels
    for c in range(C):
        sel = y == c                                   # padded labels never match
        p_c = es[c] * inv
        tp_ref[c] = tp_ref[c] + part(jnp.where(sel, p_c, 0.0))
        ps_ref[c] = ps_ref[c] + part(p_c)
        cnt_ref[c] = cnt_ref[c] + part(jnp.where(sel, 1.0, 0.0))
        t_c = jnp.where(sel, xs[c], 0.0)
        xt = t_c if xt is None else xt + t_c

    logz = m + jnp.log(denom)                          # log-partition (log(C) on pads)
    ce_ref[...] = ce_ref[...] + part(logz - xt)

    @pl.when(t == pl.num_programs(2) - 1)
    def _():
        def fin(a):                                    # (C, 8, 128) -> (C, 1)
            return jnp.sum(jnp.sum(a, axis=1), axis=1, keepdims=True)
        tp = fin(tp_ref[...])
        ps = fin(ps_ref[...])
        cnt = fin(cnt_ref[...])
        ce = jnp.sum(jnp.sum(ce_ref[...], axis=0, keepdims=True),
                     axis=1, keepdims=True)            # (1, 1)
        out_ref[0, 0] = jnp.concatenate(
            [tp, ps, cnt, jnp.broadcast_to(ce, (C, 1)),
             jnp.zeros((C, NSTAT - 4), jnp.float32)], axis=1)


def _tpu_config():
    """(n_split, vmem_limit_bytes) for the current TPU generation."""
    kind = ""
    try:
        kind = jax.devices()[0].device_kind.lower()
    except Exception:
        pass
    is_v7 = "7" in kind
    vmem_cap = 0
    try:
        vmem_cap = int(getattr(pltpu.get_tpu_info(), "vmem_capacity_bytes", 0) or 0)
    except Exception:
        vmem_cap = 0
    if vmem_cap <= 0:
        vmem_cap = (64 if (is_v7 or not kind) else 128) * 1024 * 1024
    vmem_limit = max(16 * 1024 * 1024, min(int(vmem_cap * 0.75), 112 * 1024 * 1024))
    if is_v7:
        vmem_limit = min(vmem_limit, 48 * 1024 * 1024)   # 64 MiB/TC physical on v7x
    n_split = 2 if is_v7 else 1                          # 2 TensorCores/chip only on v7x
    return n_split, vmem_limit


def _compute_stats(net_output, target):
    """Returns (stats, B, C, S, pad): stats (n_split, B, C, NSTAT) = [tp, p_sum, cnt, ce]."""
    B, C = net_output.shape[0], net_output.shape[1]
    S = int(np.prod(net_output.shape[2:]))

    x = net_output.reshape(B, C, S)
    if x.dtype not in (jnp.float32, jnp.bfloat16):
        x = x.astype(jnp.float32)
    lbl_dtype = jnp.int8 if C <= 127 else jnp.int32
    y = target.reshape(B, 1, S).astype(lbl_dtype)

    n_split, vmem_limit = _tpu_config()

    # Budget-derived spatial tile (in lanes): double-buffered logits+labels blocks plus
    # the in-kernel f32 temporaries must fit comfortably inside the VMEM limit.
    per_lane = 2 * (C * x.dtype.itemsize + y.dtype.itemsize) + (2 * C + 12) * 4
    tile = int(0.7 * vmem_limit) // per_lane
    tile = min(tile, _MAX_TILE)
    tile = min(tile, ((S + _TILE_QUANT - 1) // _TILE_QUANT) * _TILE_QUANT)
    tile = max(_TILE_QUANT, (tile // _TILE_QUANT) * _TILE_QUANT)

    chunk = tile * n_split
    s_pad = ((S + chunk - 1) // chunk) * chunk
    pad = s_pad - S
    if pad:
        # Invariant: padded logits MUST be exactly 0.0 and padded labels out of range;
        # the exact analytic correction in dc_and_ce_loss depends on it.
        x = jnp.pad(x, ((0, 0), (0, 0), (0, pad)))
        y = jnp.pad(y, ((0, 0), (0, 0), (0, pad)), constant_values=-1)

    r_total = s_pad // _LANES
    r_tile = tile // _LANES
    tiles_per_split = s_pad // chunk
    x = x.reshape(B, C, r_total, _LANES)
    y = y.reshape(B, 1, r_total, _LANES)

    stats = pl.pallas_call(
        _stats_kernel,
        out_shape=jax.ShapeDtypeStruct((n_split, B, C, NSTAT), jnp.float32),
        grid_spec=pltpu.PrefetchScalarGridSpec(
            num_scalar_prefetch=0,
            grid=(n_split, B, tiles_per_split),
            in_specs=[
                pl.BlockSpec((1, C, r_tile, _LANES),
                             lambda s, b, t: (b, 0, s * tiles_per_split + t, 0)),
                pl.BlockSpec((1, 1, r_tile, _LANES),
                             lambda s, b, t: (b, 0, s * tiles_per_split + t, 0)),
            ],
            out_specs=pl.BlockSpec((1, 1, C, NSTAT),
                                   lambda s, b, t: (s, b, 0, 0)),
            scratch_shapes=[
                pltpu.VMEM((C, 8, _LANES), jnp.float32),   # tp partials
                pltpu.VMEM((C, 8, _LANES), jnp.float32),   # p_sum partials
                pltpu.VMEM((C, 8, _LANES), jnp.float32),   # one-hot count partials
                pltpu.VMEM((8, _LANES), jnp.float32),      # CE partials
            ],
        ),
        compiler_params=pltpu.CompilerParams(
            dimension_semantics=("parallel", "parallel", "arbitrary"),
            vmem_limit_bytes=int(vmem_limit)),
    )(x, y)
    return stats, B, C, S, pad


def dc_and_ce_loss(net_output, target, *, weight_ce=1.0, weight_dice=1.0,
                   smooth=1e-5, do_bg=False):
    """Forward of DC_and_CE_loss (ignore_label=None, batch_dice=False, ddp=False)."""
    stats, B, C, S, pad = _compute_stats(net_output, target)

    tp = jnp.sum(stats[..., 0], axis=0)        # (B, C)
    p_sum = jnp.sum(stats[..., 1], axis=0)     # (B, C), includes padded pixels
    cnt = jnp.sum(stats[..., 2], axis=0)       # (B, C)  = tp + fn
    ce_sum = jnp.sum(stats[:, :, 0, 3])        # total logZ - x_target, incl. pads

    if pad:
        # Analytic pad correction: padded logits are 0 -> uniform softmax (1/C per
        # class) and logZ == log(C) per padded pixel, per batch element.
        p_sum = p_sum - jnp.float32(pad) / C
        ce_sum = ce_sum - jnp.float32(B * pad) * jnp.log(jnp.float32(C))

    fp = p_sum - tp
    fn = cnt - tp
    total = float(S)                           # tp + fp + fn + tn == S analytically

    # --- SoftDiceLoss (apply_nonlin=softmax, batch_dice=False) ---
    nominator = 2.0 * tp
    denominator = 2.0 * tp + fp + fn
    dc = (nominator + smooth) / jnp.maximum(denominator + smooth, 1e-8)
    if not do_bg:
        dc = dc[:, 1:]
    dc_loss = -jnp.mean(dc)

    # --- RobustCrossEntropyLoss (mean over all pixels) ---
    ce_loss = ce_sum / (B * S)

    # --- VolumetricLoss ---
    potential = (fn - fp) / total              # == ((tp+fn) - (tp+fp)) / total
    vl_loss = jnp.mean(jnp.square(potential[:, 0]))

    return weight_ce * ce_loss + weight_dice * dc_loss + 1.0 * vl_loss


def _reference(net_output, target, *, weight_ce=1.0, weight_dice=1.0,
               smooth=1e-5, do_bg=False):
    """Pure-JAX reference mirroring the PyTorch semantics."""
    B, C = net_output.shape[0], net_output.shape[1]
    S = int(np.prod(net_output.shape[2:]))
    x = net_output.reshape(B, C, S).astype(jnp.float32)
    y = target.reshape(B, S).astype(jnp.int32)
    p = jax.nn.softmax(x, axis=1)
    onehot = jax.nn.one_hot(y, C, axis=1, dtype=jnp.float32)
    tp = jnp.sum(p * onehot, axis=2)
    fp = jnp.sum(p * (1.0 - onehot), axis=2)
    fn = jnp.sum((1.0 - p) * onehot, axis=2)
    tn = jnp.sum((1.0 - p) * (1.0 - onehot), axis=2)
    dc = (2.0 * tp + smooth) / jnp.clip(2.0 * tp + fp + fn + smooth, 1e-8)
    if not do_bg:
        dc = dc[:, 1:]
    dc_loss = -jnp.mean(dc)
    logp = jax.nn.log_softmax(x, axis=1)
    ce_loss = -jnp.mean(jnp.sum(logp * onehot, axis=1))
    vl_loss = jnp.mean(jnp.square(((fn - fp) / (tp + fp + fn + tn))[:, 0]))
    return weight_ce * ce_loss + weight_dice * dc_loss + 1.0 * vl_loss


if __name__ == "__main__":
    key = jax.random.PRNGKey(0)
    k1, k2 = jax.random.split(key)
    B, C, H, W = 2, 4, 16, 16
    net_output = jax.random.normal(k1, (B, C, H, W), dtype=jnp.float32)   # logits, NCHW
    target = jax.random.randint(k2, (B, 1, H, W), 0, C, dtype=jnp.int32)  # (b, 1, x, y)

    out = jax.block_until_ready(dc_and_ce_loss(net_output, target))
    ref = jax.block_until_ready(_reference(net_output, target))
    assert np.allclose(np.asarray(out), np.asarray(ref), atol=1e-4, rtol=1e-4), (out, ref)
    print("KERNEL_OK")
</pallas_src>

<mosaic_0001>
module attributes {stable_mosaic.version = 11 : i64} {
  func.func @_stats_kernel(%arg0: i32, %arg1: i32, %arg2: i32, %arg3: memref<1x4x32x128xf32, #tpu.memory_space<vmem>>, %arg4: memref<1x1x32x128xi8, #tpu.memory_space<vmem>>, %arg5: memref<1x1x4x8xf32, #tpu.memory_space<vmem>>, %arg6: memref<4x8x128xf32, #tpu.memory_space<vmem>>, %arg7: memref<4x8x128xf32, #tpu.memory_space<vmem>>, %arg8: memref<4x8x128xf32, #tpu.memory_space<vmem>>, %arg9: memref<8x128xf32, #tpu.memory_space<vmem>>) attributes {dimension_semantics = [#tpu.dimension_semantics<parallel>, #tpu.dimension_semantics<parallel>, #tpu.dimension_semantics<arbitrary>], iteration_bounds = array<i64: 1, 2, 1>, scalar_prefetch = 0 : i64, scratch_operands = 4 : i64, tpu.core_type = #tpu.core_type<tc>, window_params = [{transform_indices = @transform_0, window_bounds = array<i64: 1, 4, 32, 128>}, {transform_indices = @transform_1, window_bounds = array<i64: 1, 1, 32, 128>}, {transform_indices = @transform_2, window_bounds = array<i64: 1, 1, 4, 8>}]} {
    %c0_i32 = arith.constant 0 : i32
    %0 = arith.cmpi eq, %arg2, %c0_i32 : i32
    %1 = arith.extui %0 : i1 to i32
    %c0_i32_0 = arith.constant 0 : i32
    %2 = arith.cmpi ne, %1, %c0_i32_0 : i32
    scf.if %2 {
      %cst_125 = arith.constant 0.000000e+00 : f32
      %183 = vector.broadcast %cst_125 : f32 to vector<4x8x128xf32>
      %c0_126 = arith.constant 0 : index
      %c0_127 = arith.constant 0 : index
      %c0_128 = arith.constant 0 : index
      %184 = vector.load %arg6[%c0_126, %c0_127, %c0_128] : memref<4x8x128xf32, #tpu.memory_space<vmem>>, vector<4x8x128xf32>
      tpu.vector_store %arg6[%c0_126, %c0_127, %c0_128], %183 {strides = array<i32>} : memref<4x8x128xf32, #tpu.memory_space<vmem>>, vector<4x8x128xf32>,
      %cst_129 = arith.constant 0.000000e+00 : f32
      %185 = vector.broadcast %cst_129 : f32 to vector<4x8x128xf32>
      %c0_130 = arith.constant 0 : index
      %c0_131 = arith.constant 0 : index
      %c0_132 = arith.constant 0 : index
      %186 = vector.load %arg7[%c0_130, %c0_131, %c0_132] : memref<4x8x128xf32, #tpu.memory_space<vmem>>, vector<4x8x128xf32>
      tpu.vector_store %arg7[%c0_130, %c0_131, %c0_132], %185 {strides = array<i32>} : memref<4x8x128xf32, #tpu.memory_space<vmem>>, vector<4x8x128xf32>,
      %cst_133 = arith.constant 0.000000e+00 : f32
      %187 = vector.broadcast %cst_133 : f32 to vector<4x8x128xf32>
      %c0_134 = arith.constant 0 : index
      %c0_135 = arith.constant 0 : index
      %c0_136 = arith.constant 0 : index
      %188 = vector.load %arg8[%c0_134, %c0_135, %c0_136] : memref<4x8x128xf32, #tpu.memory_space<vmem>>, vector<4x8x128xf32>
      tpu.vector_store %arg8[%c0_134, %c0_135, %c0_136], %187 {strides = array<i32>} : memref<4x8x128xf32, #tpu.memory_space<vmem>>, vector<4x8x128xf32>,
      %cst_137 = arith.constant 0.000000e+00 : f32
      %189 = vector.broadcast %cst_137 : f32 to vector<8x128xf32>
      %c0_138 = arith.constant 0 : index
      %c0_139 = arith.constant 0 : index
      %190 = vector.load %arg9[%c0_138, %c0_139] : memref<8x128xf32, #tpu.memory_space<vmem>>, vector<8x128xf32>
      tpu.vector_store %arg9[%c0_138, %c0_139], %189 {strides = array<i32>} : memref<8x128xf32, #tpu.memory_space<vmem>>, vector<8x128xf32>,
    } else {
    }
    %c0 = arith.constant 0 : index
    %c0_1 = arith.constant 0 : index
    %c0_2 = arith.constant 0 : index
    %c0_3 = arith.constant 0 : index
    %3 = vector.load %arg3[%c0, %c0_1, %c0_2, %c0_3] : memref<1x4x32x128xf32, #tpu.memory_space<vmem>>, vector<1x1x32x128xf32>
    %4 = vector.shape_cast %3 : vector<1x1x32x128xf32> to vector<32x128xf32>
    %c0_4 = arith.constant 0 : index
    %c1 = arith.constant 1 : index
    %c0_5 = arith.constant 0 : index
    %c0_6 = arith.constant 0 : index
    %5 = vector.load %arg3[%c0_4, %c1, %c0_5, %c0_6] : memref<1x4x32x128xf32, #tpu.memory_space<vmem>>, vector<1x1x32x128xf32>
    %6 = vector.shape_cast %5 : vector<1x1x32x128xf32> to vector<32x128xf32>
    %c0_7 = arith.constant 0 : index
    %c2 = arith.constant 2 : index
    %c0_8 = arith.constant 0 : index
    %c0_9 = arith.constant 0 : index
    %7 = vector.load %arg3[%c0_7, %c2, %c0_8, %c0_9] : memref<1x4x32x128xf32, #tpu.memory_space<vmem>>, vector<1x1x32x128xf32>
    %8 = vector.shape_cast %7 : vector<1x1x32x128xf32> to vector<32x128xf32>
    %c0_10 = arith.constant 0 : index
    %c3 = arith.constant 3 : index
    %c0_11 = arith.constant 0 : index
    %c0_12 = arith.constant 0 : index
    %9 = vector.load %arg3[%c0_10, %c3, %c0_11, %c0_12] : memref<1x4x32x128xf32, #tpu.memory_space<vmem>>, vector<1x1x32x128xf32>
    %10 = vector.shape_cast %9 : vector<1x1x32x128xf32> to vector<32x128xf32>
    %c0_13 = arith.constant 0 : index
    %c0_14 = arith.constant 0 : index
    %c0_15 = arith.constant 0 : index
    %c0_16 = arith.constant 0 : index
    %11 = vector.load %arg4[%c0_13, %c0_14, %c0_15, %c0_16] : memref<1x1x32x128xi8, #tpu.memory_space<vmem>>, vector<1x1x32x128xi8>
    %12 = vector.shape_cast %11 : vector<1x1x32x128xi8> to vector<32x128xi8>
    %13 = arith.extsi %12 : vector<32x128xi8> to vector<32x128xi32>
    %14 = arith.maximumf %4, %6 : vector<32x128xf32>
    %15 = arith.maximumf %14, %8 : vector<32x128xf32>
    %16 = arith.maximumf %15, %10 : vector<32x128xf32>
    %17 = arith.subf %4, %16 : vector<32x128xf32>
    %18 = math.exp %17 : vector<32x128xf32>
    %19 = arith.subf %6, %16 : vector<32x128xf32>
    %20 = math.exp %19 : vector<32x128xf32>
    %21 = arith.subf %8, %16 : vector<32x128xf32>
    %22 = math.exp %21 : vector<32x128xf32>
    %23 = arith.subf %10, %16 : vector<32x128xf32>
    %24 = math.exp %23 : vector<32x128xf32>
    %25 = arith.addf %18, %20 : vector<32x128xf32>
    %26 = arith.addf %25, %22 : vector<32x128xf32>
    %27 = arith.addf %26, %24 : vector<32x128xf32>
    %28 = tpu.reciprocal %27 {approx = true} : vector<32x128xf32> -> vector<32x128xf32>
    %29 = arith.mulf %27, %28 : vector<32x128xf32>
    %cst = arith.constant 2.000000e+00 : f32
    %30 = vector.broadcast %cst : f32 to vector<32x128xf32>
    %31 = arith.subf %30, %29 : vector<32x128xf32>
    %32 = arith.mulf %28, %31 : vector<32x128xf32>
    %c0_i32_17 = arith.constant 0 : i32
    %33 = vector.broadcast %c0_i32_17 : i32 to vector<32x128xi32>
    %34 = arith.cmpi eq, %13, %33 : vector<32x128xi32>
    %35 = arith.mulf %18, %32 : vector<32x128xf32>
    %c0_18 = arith.constant 0 : index
    %c0_19 = arith.constant 0 : index
    %c0_20 = arith.constant 0 : index
    %36 = vector.load %arg6[%c0_18, %c0_19, %c0_20] : memref<4x8x128xf32, #tpu.memory_space<vmem>>, vector<1x8x128xf32>
    %37 = vector.shape_cast %36 : vector<1x8x128xf32> to vector<8x128xf32>
    %cst_21 = arith.constant 0.000000e+00 : f32
    %38 = vector.broadcast %cst_21 : f32 to vector<32x128xf32>
    %39 = arith.select %34, %35, %38 : vector<32x128xi1>, vector<32x128xf32>
    %40 = vector.shape_cast %39 : vector<32x128xf32> to vector<4x8x128xf32>
    %cst_22 = arith.constant dense<0.000000e+00> : vector<8x128xf32>
    %41 = vector.multi_reduction <add>, %40, %cst_22 [0] : vector<4x8x128xf32> to vector<8x128xf32>
    %42 = arith.addf %37, %41 : vector<8x128xf32>
    %c0_23 = arith.constant 0 : index
    %c0_24 = arith.constant 0 : index
    %c0_25 = arith.constant 0 : index
    %43 = vector.load %arg6[%c0_23, %c0_24, %c0_25] : memref<4x8x128xf32, #tpu.memory_space<vmem>>, vector<1x8x128xf32>
    %44 = vector.shape_cast %43 : vector<1x8x128xf32> to vector<8x128xf32>
    %45 = vector.shape_cast %42 : vector<8x128xf32> to vector<1x8x128xf32>
    tpu.vector_store %arg6[%c0_23, %c0_24, %c0_25], %45 {strides = array<i32>} : memref<4x8x128xf32, #tpu.memory_space<vmem>>, vector<1x8x128xf32>,
    %c0_26 = arith.constant 0 : index
    %c0_27 = arith.constant 0 : index
    %c0_28 = arith.constant 0 : index
    %46 = vector.load %arg7[%c0_26, %c0_27, %c0_28] : memref<4x8x128xf32, #tpu.memory_space<vmem>>, vector<1x8x128xf32>
    %47 = vector.shape_cast %46 : vector<1x8x128xf32> to vector<8x128xf32>
    %48 = vector.shape_cast %35 : vector<32x128xf32> to vector<4x8x128xf32>
    %cst_29 = arith.constant dense<0.000000e+00> : vector<8x128xf32>
    %49 = vector.multi_reduction <add>, %48, %cst_29 [0] : vector<4x8x128xf32> to vector<8x128xf32>
    %50 = arith.addf %47, %49 : vector<8x128xf32>
    %c0_30 = arith.constant 0 : index
    %c0_31 = arith.constant 0 : index
    %c0_32 = arith.constant 0 : index
    %51 = vector.load %arg7[%c0_30, %c0_31, %c0_32] : memref<4x8x128xf32, #tpu.memory_space<vmem>>, vector<1x8x128xf32>
    %52 = vector.shape_cast %51 : vector<1x8x128xf32> to vector<8x128xf32>
    %53 = vector.shape_cast %50 : vector<8x128xf32> to vector<1x8x128xf32>
    tpu.vector_store %arg7[%c0_30, %c0_31, %c0_32], %53 {strides = array<i32>} : memref<4x8x128xf32, #tpu.memory_space<vmem>>, vector<1x8x128xf32>,
    %c0_33 = arith.constant 0 : index
    %c0_34 = arith.constant 0 : index
    %c0_35 = arith.constant 0 : index
    %54 = vector.load %arg8[%c0_33, %c0_34, %c0_35] : memref<4x8x128xf32, #tpu.memory_space<vmem>>, vector<1x8x128xf32>
    %55 = vector.shape_cast %54 : vector<1x8x128xf32> to vector<8x128xf32>
    %cst_36 = arith.constant 1.000000e+00 : f32
    %cst_37 = arith.constant 0.000000e+00 : f32
    %56 = vector.broadcast %cst_36 : f32 to vector<32x128xf32>
    %57 = vector.broadcast %cst_37 : f32 to vector<32x128xf32>
    %58 = arith.select %34, %56, %57 : vector<32x128xi1>, vector<32x128xf32>
    %59 = vector.shape_cast %58 : vector<32x128xf32> to vector<4x8x128xf32>
    %cst_38 = arith.constant dense<0.000000e+00> : vector<8x128xf32>
    %60 = vector.multi_reduction <add>, %59, %cst_38 [0] : vector<4x8x128xf32> to vector<8x128xf32>
    %61 = arith.addf %55, %60 : vector<8x128xf32>
    %c0_39 = arith.constant 0 : index
    %c0_40 = arith.constant 0 : index
    %c0_41 = arith.constant 0 : index
    %62 = vector.load %arg8[%c0_39, %c0_40, %c0_41] : memref<4x8x128xf32, #tpu.memory_space<vmem>>, vector<1x8x128xf32>
    %63 = vector.shape_cast %62 : vector<1x8x128xf32> to vector<8x128xf32>
    %64 = vector.shape_cast %61 : vector<8x128xf32> to vector<1x8x128xf32>
    tpu.vector_store %arg8[%c0_39, %c0_40, %c0_41], %64 {strides = array<i32>} : memref<4x8x128xf32, #tpu.memory_space<vmem>>, vector<1x8x128xf32>,
    %cst_42 = arith.constant 0.000000e+00 : f32
    %65 = vector.broadcast %cst_42 : f32 to vector<32x128xf32>
    %66 = arith.select %34, %4, %65 : vector<32x128xi1>, vector<32x128xf32>
    %c1_i32 = arith.constant 1 : i32
    %67 = vector.broadcast %c1_i32 : i32 to vector<32x128xi32>
    %68 = arith.cmpi eq, %13, %67 : vector<32x128xi32>
    %69 = arith.mulf %20, %32 : vector<32x128xf32>
    %c1_43 = arith.constant 1 : index
    %c0_44 = arith.constant 0 : index
    %c0_45 = arith.constant 0 : index
    %70 = vector.load %arg6[%c1_43, %c0_44, %c0_45] : memref<4x8x128xf32, #tpu.memory_space<vmem>>, vector<1x8x128xf32>
    %71 = vector.shape_cast %70 : vector<1x8x128xf32> to vector<8x128xf32>
    %cst_46 = arith.constant 0.000000e+00 : f32
    %72 = vector.broadcast %cst_46 : f32 to vector<32x128xf32>
    %73 = arith.select %68, %69, %72 : vector<32x128xi1>, vector<32x128xf32>
    %74 = vector.shape_cast %73 : vector<32x128xf32> to vector<4x8x128xf32>
    %cst_47 = arith.constant dense<0.000000e+00> : vector<8x128xf32>
    %75 = vector.multi_reduction <add>, %74, %cst_47 [0] : vector<4x8x128xf32> to vector<8x128xf32>
    %76 = arith.addf %71, %75 : vector<8x128xf32>
    %c1_48 = arith.constant 1 : index
    %c0_49 = arith.constant 0 : index
    %c0_50 = arith.constant 0 : index
    %77 = vector.load %arg6[%c1_48, %c0_49, %c0_50] : memref<4x8x128xf32, #tpu.memory_space<vmem>>, vector<1x8x128xf32>
    %78 = vector.shape_cast %77 : vector<1x8x128xf32> to vector<8x128xf32>
    %79 = vector.shape_cast %76 : vector<8x128xf32> to vector<1x8x128xf32>
    tpu.vector_store %arg6[%c1_48, %c0_49, %c0_50], %79 {strides = array<i32>} : memref<4x8x128xf32, #tpu.memory_space<vmem>>, vector<1x8x128xf32>,
    %c1_51 = arith.constant 1 : index
    %c0_52 = arith.constant 0 : index
    %c0_53 = arith.constant 0 : index
    %80 = vector.load %arg7[%c1_51, %c0_52, %c0_53] : memref<4x8x128xf32, #tpu.memory_space<vmem>>, vector<1x8x128xf32>
    %81 = vector.shape_cast %80 : vector<1x8x128xf32> to vector<8x128xf32>
    %82 = vector.shape_cast %69 : vector<32x128xf32> to vector<4x8x128xf32>
    %cst_54 = arith.constant dense<0.000000e+00> : vector<8x128xf32>
    %83 = vector.multi_reduction <add>, %82, %cst_54 [0] : vector<4x8x128xf32> to vector<8x128xf32>
    %84 = arith.addf %81, %83 : vector<8x128xf32>
    %c1_55 = arith.constant 1 : index
    %c0_56 = arith.constant 0 : index
    %c0_57 = arith.constant 0 : index
    %85 = vector.load %arg7[%c1_55, %c0_56, %c0_57] : memref<4x8x128xf32, #tpu.memory_space<vmem>>, vector<1x8x128xf32>
    %86 = vector.shape_cast %85 : vector<1x8x128xf32> to vector<8x128xf32>
    %87 = vector.shape_cast %84 : vector<8x128xf32> to vector<1x8x128xf32>
    tpu.vector_store %arg7[%c1_55, %c0_56, %c0_57], %87 {strides = array<i32>} : memref<4x8x128xf32, #tpu.memory_space<vmem>>, vector<1x8x128xf32>,
    %c1_58 = arith.constant 1 : index
    %c0_59 = arith.constant 0 : index
    %c0_60 = arith.constant 0 : index
    %88 = vector.load %arg8[%c1_58, %c0_59, %c0_60] : memref<4x8x128xf32, #tpu.memory_space<vmem>>, vector<1x8x128xf32>
    %89 = vector.shape_cast %88 : vector<1x8x128xf32> to vector<8x128xf32>
    %cst_61 = arith.constant 1.000000e+00 : f32
    %cst_62 = arith.constant 0.000000e+00 : f32
    %90 = vector.broadcast %cst_61 : f32 to vector<32x128xf32>
    %91 = vector.broadcast %cst_62 : f32 to vector<32x128xf32>
    %92 = arith.select %68, %90, %91 : vector<32x128xi1>, vector<32x128xf32>
    %93 = vector.shape_cast %92 : vector<32x128xf32> to vector<4x8x128xf32>
    %cst_63 = arith.constant dense<0.000000e+00> : vector<8x128xf32>
    %94 = vector.multi_reduction <add>, %93, %cst_63 [0] : vector<4x8x128xf32> to vector<8x128xf32>
    %95 = arith.addf %89, %94 : vector<8x128xf32>
    %c1_64 = arith.constant 1 : index
    %c0_65 = arith.constant 0 : index
    %c0_66 = arith.constant 0 : index
    %96 = vector.load %arg8[%c1_64, %c0_65, %c0_66] : memref<4x8x128xf32, #tpu.memory_space<vmem>>, vector<1x8x128xf32>
    %97 = vector.shape_cast %96 : vector<1x8x128xf32> to vector<8x128xf32>
    %98 = vector.shape_cast %95 : vector<8x128xf32> to vector<1x8x128xf32>
    tpu.vector_store %arg8[%c1_64, %c0_65, %c0_66], %98 {strides = array<i32>} : memref<4x8x128xf32, #tpu.memory_space<vmem>>, vector<1x8x128xf32>,
    %cst_67 = arith.constant 0.000000e+00 : f32
    %99 = vector.broadcast %cst_67 : f32 to vector<32x128xf32>
    %100 = arith.select %68, %6, %99 : vector<32x128xi1>, vector<32x128xf32>
    %101 = arith.addf %66, %100 : vector<32x128xf32>
    %c2_i32 = arith.constant 2 : i32
    %102 = vector.broadcast %c2_i32 : i32 to vector<32x128xi32>
    %103 = arith.cmpi eq, %13, %102 : vector<32x128xi32>
    %104 = arith.mulf %22, %32 : vector<32x128xf32>
    %c2_68 = arith.constant 2 : index
    %c0_69 = arith.constant 0 : index
    %c0_70 = arith.constant 0 : index
    %105 = vector.load %arg6[%c2_68, %c0_69, %c0_70] : memref<4x8x128xf32, #tpu.memory_space<vmem>>, vector<1x8x128xf32>
    %106 = vector.shape_cast %105 : vector<1x8x128xf32> to vector<8x128xf32>
    %cst_71 = arith.constant 0.000000e+00 : f32
    %107 = vector.broadcast %cst_71 : f32 to vector<32x128xf32>
    %108 = arith.select %103, %104, %107 : vector<32x128xi1>, vector<32x128xf32>
    %109 = vector.shape_cast %108 : vector<32x128xf32> to vector<4x8x128xf32>
    %cst_72 = arith.constant dense<0.000000e+00> : vector<8x128xf32>
    %110 = vector.multi_reduction <add>, %109, %cst_72 [0] : vector<4x8x128xf32> to vector<8x128xf32>
    %111 = arith.addf %106, %110 : vector<8x128xf32>
    %c2_73 = arith.constant 2 : index
    %c0_74 = arith.constant 0 : index
    %c0_75 = arith.constant 0 : index
    %112 = vector.load %arg6[%c2_73, %c0_74, %c0_75] : memref<4x8x128xf32, #tpu.memory_space<vmem>>, vector<1x8x128xf32>
    %113 = vector.shape_cast %112 : vector<1x8x128xf32> to vector<8x128xf32>
    %114 = vector.shape_cast %111 : vector<8x128xf32> to vector<1x8x128xf32>
    tpu.vector_store %arg6[%c2_73, %c0_74, %c0_75], %114 {strides = array<i32>} : memref<4x8x128xf32, #tpu.memory_space<vmem>>, vector<1x8x128xf32>,
    %c2_76 = arith.constant 2 : index
    %c0_77 = arith.constant 0 : index
    %c0_78 = arith.constant 0 : index
    %115 = vector.load %arg7[%c2_76, %c0_77, %c0_78] : memref<4x8x128xf32, #tpu.memory_space<vmem>>, vector<1x8x128xf32>
    %116 = vector.shape_cast %115 : vector<1x8x128xf32> to vector<8x128xf32>
    %117 = vector.shape_cast %104 : vector<32x128xf32> to vector<4x8x128xf32>
    %cst_79 = arith.constant dense<0.000000e+00> : vector<8x128xf32>
    %118 = vector.multi_reduction <add>, %117, %cst_79 [0] : vector<4x8x128xf32> to vector<8x128xf32>
    %119 = arith.addf %116, %118 : vector<8x128xf32>
    %c2_80 = arith.constant 2 : index
    %c0_81 = arith.constant 0 : index
    %c0_82 = arith.constant 0 : index
    %120 = vector.load %arg7[%c2_80, %c0_81, %c0_82] : memref<4x8x128xf32, #tpu.memory_space<vmem>>, vector<1x8x128xf32>
    %121 = vector.shape_cast %120 : vector<1x8x128xf32> to vector<8x128xf32>
    %122 = vector.shape_cast %119 : vector<8x128xf32> to vector<1x8x128xf32>
    tpu.vector_store %arg7[%c2_80, %c0_81, %c0_82], %122 {strides = array<i32>} : memref<4x8x128xf32, #tpu.memory_space<vmem>>, vector<1x8x128xf32>,
    %c2_83 = arith.constant 2 : index
    %c0_84 = arith.constant 0 : index
    %c0_85 = arith.constant 0 : index
    %123 = vector.load %arg8[%c2_83, %c0_84, %c0_85] : memref<4x8x128xf32, #tpu.memory_space<vmem>>, vector<1x8x128xf32>
    %124 = vector.shape_cast %123 : vector<1x8x128xf32> to vector<8x128xf32>
    %cst_86 = arith.constant 1.000000e+00 : f32
    %cst_87 = arith.constant 0.000000e+00 : f32
    %125 = vector.broadcast %cst_86 : f32 to vector<32x128xf32>
    %126 = vector.broadcast %cst_87 : f32 to vector<32x128xf32>
    %127 = arith.select %103, %125, %126 : vector<32x128xi1>, vector<32x128xf32>
    %128 = vector.shape_cast %127 : vector<32x128xf32> to vector<4x8x128xf32>
    %cst_88 = arith.constant dense<0.000000e+00> : vector<8x128xf32>
    %129 = vector.multi_reduction <add>, %128, %cst_88 [0] : vector<4x8x128xf32> to vector<8x128xf32>
    %130 = arith.addf %124, %129 : vector<8x128xf32>
    %c2_89 = arith.constant 2 : index
    %c0_90 = arith.constant 0 : index
    %c0_91 = arith.constant 0 : index
    %131 = vector.load %arg8[%c2_89, %c0_90, %c0_91] : memref<4x8x128xf32, #tpu.memory_space<vmem>>, vector<1x8x128xf32>
    %132 = vector.shape_cast %131 : vector<1x8x128xf32> to vector<8x128xf32>
    %133 = vector.shape_cast %130 : vector<8x128xf32> to vector<1x8x128xf32>
    tpu.vector_store %arg8[%c2_89, %c0_90, %c0_91], %133 {strides = array<i32>} : memref<4x8x128xf32, #tpu.memory_space<vmem>>, vector<1x8x128xf32>,
    %cst_92 = arith.constant 0.000000e+00 : f32
    %134 = vector.broadcast %cst_92 : f32 to vector<32x128xf32>
    %135 = arith.select %103, %8, %134 : vector<32x128xi1>, vector<32x128xf32>
    %136 = arith.addf %101, %135 : vector<32x128xf32>
    %c3_i32 = arith.constant 3 : i32
    %137 = vector.broadcast %c3_i32 : i32 to vector<32x128xi32>
    %138 = arith.cmpi eq, %13, %137 : vector<32x128xi32>
    %139 = arith.mulf %24, %32 : vector<32x128xf32>
    %c3_93 = arith.constant 3 : index
    %c0_94 = arith.constant 0 : index
    %c0_95 = arith.constant 0 : index
    %140 = vector.load %arg6[%c3_93, %c0_94, %c0_95] : memref<4x8x128xf32, #tpu.memory_space<vmem>>, vector<1x8x128xf32>
    %141 = vector.shape_cast %140 : vector<1x8x128xf32> to vector<8x128xf32>
    %cst_96 = arith.constant 0.000000e+00 : f32
    %142 = vector.broadcast %cst_96 : f32 to vector<32x128xf32>
    %143 = arith.select %138, %139, %142 : vector<32x128xi1>, vector<32x128xf32>
    %144 = vector.shape_cast %143 : vector<32x128xf32> to vector<4x8x128xf32>
    %cst_97 = arith.constant dense<0.000000e+00> : vector<8x128xf32>
    %145 = vector.multi_reduction <add>, %144, %cst_97 [0] : vector<4x8x128xf32> to vector<8x128xf32>
    %146 = arith.addf %141, %145 : vector<8x128xf32>
    %c3_98 = arith.constant 3 : index
    %c0_99 = arith.constant 0 : index
    %c0_100 = arith.constant 0 : index
    %147 = vector.load %arg6[%c3_98, %c0_99, %c0_100] : memref<4x8x128xf32, #tpu.memory_space<vmem>>, vector<1x8x128xf32>
    %148 = vector.shape_cast %147 : vector<1x8x128xf32> to vector<8x128xf32>
    %149 = vector.shape_cast %146 : vector<8x128xf32> to vector<1x8x128xf32>
    tpu.vector_store %arg6[%c3_98, %c0_99, %c0_100], %149 {strides = array<i32>} : memref<4x8x128xf32, #tpu.memory_space<vmem>>, vector<1x8x128xf32>,
    %c3_101 = arith.constant 3 : index
    %c0_102 = arith.constant 0 : index
    %c0_103 = arith.constant 0 : index
    %150 = vector.load %arg7[%c3_101, %c0_102, %c0_103] : memref<4x8x128xf32, #tpu.memory_space<vmem>>, vector<1x8x128xf32>
    %151 = vector.shape_cast %150 : vector<1x8x128xf32> to vector<8x128xf32>
    %152 = vector.shape_cast %139 : vector<32x128xf32> to vector<4x8x128xf32>
    %cst_104 = arith.constant dense<0.000000e+00> : vector<8x128xf32>
    %153 = vector.multi_reduction <add>, %152, %cst_104 [0] : vector<4x8x128xf32> to vector<8x128xf32>
    %154 = arith.addf %151, %153 : vector<8x128xf32>
    %c3_105 = arith.constant 3 : index
    %c0_106 = arith.constant 0 : index
    %c0_107 = arith.constant 0 : index
    %155 = vector.load %arg7[%c3_105, %c0_106, %c0_107] : memref<4x8x128xf32, #tpu.memory_space<vmem>>, vector<1x8x128xf32>
    %156 = vector.shape_cast %155 : vector<1x8x128xf32> to vector<8x128xf32>
    %157 = vector.shape_cast %154 : vector<8x128xf32> to vector<1x8x128xf32>
    tpu.vector_store %arg7[%c3_105, %c0_106, %c0_107], %157 {strides = array<i32>} : memref<4x8x128xf32, #tpu.memory_space<vmem>>, vector<1x8x128xf32>,
    %c3_108 = arith.constant 3 : index
    %c0_109 = arith.constant 0 : index
    %c0_110 = arith.constant 0 : index
    %158 = vector.load %arg8[%c3_108, %c0_109, %c0_110] : memref<4x8x128xf32, #tpu.memory_space<vmem>>, vector<1x8x128xf32>
    %159 = vector.shape_cast %158 : vector<1x8x128xf32> to vector<8x128xf32>
    %cst_111 = arith.constant 1.000000e+00 : f32
    %cst_112 = arith.constant 0.000000e+00 : f32
    %160 = vector.broadcast %cst_111 : f32 to vector<32x128xf32>
    %161 = vector.broadcast %cst_112 : f32 to vector<32x128xf32>
    %162 = arith.select %138, %160, %161 : vector<32x128xi1>, vector<32x128xf32>
    %163 = vector.shape_cast %162 : vector<32x128xf32> to vector<4x8x128xf32>
    %cst_113 = arith.constant dense<0.000000e+00> : vector<8x128xf32>
    %164 = vector.multi_reduction <add>, %163, %cst_113 [0] : vector<4x8x128xf32> to vector<8x128xf32>
    %165 = arith.addf %159, %164 : vector<8x128xf32>
    %c3_114 = arith.constant 3 : index
    %c0_115 = arith.constant 0 : index
    %c0_116 = arith.constant 0 : index
    %166 = vector.load %arg8[%c3_114, %c0_115, %c0_116] : memref<4x8x128xf32, #tpu.memory_space<vmem>>, vector<1x8x128xf32>
    %167 = vector.shape_cast %166 : vector<1x8x128xf32> to vector<8x128xf32>
    %168 = vector.shape_cast %165 : vector<8x128xf32> to vector<1x8x128xf32>
    tpu.vector_store %arg8[%c3_114, %c0_115, %c0_116], %168 {strides = array<i32>} : memref<4x8x128xf32, #tpu.memory_space<vmem>>, vector<1x8x128xf32>,
    %cst_117 = arith.constant 0.000000e+00 : f32
    %169 = vector.broadcast %cst_117 : f32 to vector<32x128xf32>
    %170 = arith.select %138, %10, %169 : vector<32x128xi1>, vector<32x128xf32>
    %171 = arith.addf %136, %170 : vector<32x128xf32>
    %172 = math.log %27 : vector<32x128xf32>
    %173 = arith.addf %16, %172 : vector<32x128xf32>
    %c0_118 = arith.constant 0 : index
    %c0_119 = arith.constant 0 : index
    %174 = vector.load %arg9[%c0_118, %c0_119] : memref<8x128xf32, #tpu.memory_space<vmem>>, vector<8x128xf32>
    %175 = arith.subf %173, %171 : vector<32x128xf32>
    %176 = vector.shape_cast %175 : vector<32x128xf32> to vector<4x8x128xf32>
    %cst_120 = arith.constant dense<0.000000e+00> : vector<8x128xf32>
    %177 = vector.multi_reduction <add>, %176, %cst_120 [0] : vector<4x8x128xf32> to vector<8x128xf32>
    %178 = arith.addf %174, %177 : vector<8x128xf32>
    %c0_121 = arith.constant 0 : index
    %c0_122 = arith.constant 0 : index
    %179 = vector.load %arg9[%c0_121, %c0_122] : memref<8x128xf32, #tpu.memory_space<vmem>>, vector<8x128xf32>
    tpu.vector_store %arg9[%c0_121, %c0_122], %178 {strides = array<i32>} : memref<8x128xf32, #tpu.memory_space<vmem>>, vector<8x128xf32>,
    %c0_i32_123 = arith.constant 0 : i32
    %180 = arith.cmpi eq, %arg2, %c0_i32_123 : i32
    %181 = arith.extui %180 : i1 to i32
    %c0_i32_124 = arith.constant 0 : i32
    %182 = arith.cmpi ne, %181, %c0_i32_124 : i32
    scf.if %182 {
      %c0_125 = arith.constant 0 : index
      %c0_126 = arith.constant 0 : index
      %c0_127 = arith.constant 0 : index
      %183 = vector.load %arg6[%c0_125, %c0_126, %c0_127] : memref<4x8x128xf32, #tpu.memory_space<vmem>>, vector<4x8x128xf32>
      %cst_128 = arith.constant dense<0.000000e+00> : vector<4x128xf32>
      %184 = vector.multi_reduction <add>, %183, %cst_128 [1] : vector<4x8x128xf32> to vector<4x128xf32>
      %cst_129 = arith.constant dense<0.000000e+00> : vector<4xf32>
      %185 = vector.multi_reduction <add>, %184, %cst_129 [1] : vector<4x128xf32> to vector<4xf32>
      %186 = vector.shape_cast %185 : vector<4xf32> to vector<4x1xf32>
      %c0_130 = arith.constant 0 : index
      %c0_131 = arith.constant 0 : index
      %c0_132 = arith.constant 0 : index
      %187 = vector.load %arg7[%c0_130, %c0_131, %c0_132] : memref<4x8x128xf32, #tpu.memory_space<vmem>>, vector<4x8x128xf32>
      %cst_133 = arith.constant dense<0.000000e+00> : vector<4x128xf32>
      %188 = vector.multi_reduction <add>, %187, %cst_133 [1] : vector<4x8x128xf32> to vector<4x128xf32>
      %cst_134 = arith.constant dense<0.000000e+00> : vector<4xf32>
      %189 = vector.multi_reduction <add>, %188, %cst_134 [1] : vector<4x128xf32> to vector<4xf32>
      %190 = vector.shape_cast %189 : vector<4xf32> to vector<4x1xf32>
      %c0_135 = arith.constant 0 : index
      %c0_136 = arith.constant 0 : index
      %c0_137 = arith.constant 0 : index
      %191 = vector.load %arg8[%c0_135, %c0_136, %c0_137] : memref<4x8x128xf32, #tpu.memory_space<vmem>>, vector<4x8x128xf32>
      %cst_138 = arith.constant dense<0.000000e+00> : vector<4x128xf32>
      %192 = vector.multi_reduction <add>, %191, %cst_138 [1] : vector<4x8x128xf32> to vector<4x128xf32>
      %cst_139 = arith.constant dense<0.000000e+00> : vector<4xf32>
      %193 = vector.multi_reduction <add>, %192, %cst_139 [1] : vector<4x128xf32> to vector<4xf32>
      %194 = vector.shape_cast %193 : vector<4xf32> to vector<4x1xf32>
      %c0_140 = arith.constant 0 : index
      %c0_141 = arith.constant 0 : index
      %195 = vector.load %arg9[%c0_140, %c0_141] : memref<8x128xf32, #tpu.memory_space<vmem>>, vector<8x128xf32>
      %cst_142 = arith.constant dense<0.000000e+00> : vector<128xf32>
      %196 = vector.multi_reduction <add>, %195, %cst_142 [0] : vector<8x128xf32> to vector<128xf32>
      %197 = vector.shape_cast %196 : vector<128xf32> to vector<1x128xf32>
      %cst_143 = arith.constant dense<0.000000e+00> : vector<1xf32>
      %198 = vector.multi_reduction <add>, %197, %cst_143 [1] : vector<1x128xf32> to vector<1xf32>
      %199 = vector.shape_cast %198 : vector<1xf32> to vector<1x1xf32>
      %200 = vector.shape_cast %199 : vector<1x1xf32> to vector<1x1xf32>
      %201 = vector.broadcast %200 : vector<1x1xf32> to vector<4x1xf32>
      %cst_144 = arith.constant 0.000000e+00 : f32
      %202 = vector.broadcast %cst_144 : f32 to vector<4x4xf32>
      %203 = tpu.concatenate %186, %190, %194, %201, %202 in 1 : vector<4x1xf32>, vector<4x1xf32>, vector<4x1xf32>, vector<4x1xf32>, vector<4x4xf32> -> vector<4x8xf32>
      %c0_145 = arith.constant 0 : index
      %c0_146 = arith.constant 0 : index
      %c0_147 = arith.constant 0 : index
      %c0_148 = arith.constant 0 : index
      %204 = vector.load %arg5[%c0_145, %c0_146, %c0_147, %c0_148] : memref<1x1x4x8xf32, #tpu.memory_space<vmem>>, vector<1x1x4x8xf32>
      %205 = vector.shape_cast %204 : vector<1x1x4x8xf32> to vector<4x8xf32>
      %206 = vector.shape_cast %203 : vector<4x8xf32> to vector<1x1x4x8xf32>
      tpu.vector_store %arg5[%c0_145, %c0_146, %c0_147, %c0_148], %206 {strides = array<i32>} : memref<1x1x4x8xf32, #tpu.memory_space<vmem>>, vector<1x1x4x8xf32>,
    } else {
    }
    return
  }
  func.func @transform_0(%arg0: i32, %arg1: i32, %arg2: i32) -> (i32, i32, i32, i32) {
    %c1_i32 = arith.constant 1 : i32
    %0 = arith.muli %arg0, %c1_i32 : i32
    %1 = arith.addi %0, %arg2 : i32
    %c0_i32 = arith.constant 0 : i32
    %c0_i32_0 = arith.constant 0 : i32
    %c0_i32_1 = arith.constant 0 : i32
    return %arg1, %c0_i32, %1, %c0_i32_0 : i32, i32, i32, i32
  }
  func.func @transform_1(%arg0: i32, %arg1: i32, %arg2: i32) -> (i32, i32, i32, i32) {
    %c1_i32 = arith.constant 1 : i32
    %0 = arith.muli %arg0, %c1_i32 : i32
    %1 = arith.addi %0, %arg2 : i32
    %c0_i32 = arith.constant 0 : i32
    %c0_i32_0 = arith.constant 0 : i32
    %c0_i32_1 = arith.constant 0 : i32
    return %arg1, %c0_i32, %1, %c0_i32_0 : i32, i32, i32, i32
  }
  func.func @transform_2(%arg0: i32, %arg1: i32, %arg2: i32) -> (i32, i32, i32, i32) {
    %c0_i32 = arith.constant 0 : i32
    %c0_i32_0 = arith.constant 0 : i32
    %c0_i32_1 = arith.constant 0 : i32
    return %arg0, %arg1, %c0_i32, %c0_i32_0 : i32, i32, i32, i32
  }
}

</mosaic_0001>

<llo_original>
// kernel: tpu_custom_call.1
$region0: #{tpu_custom_call.1}
  #allocation0 [shape = 'u32[]', space=smem, size = 0x4, offset = 0x4, fixed_abs, tag = 'smem constant byte address 0x4 - core index']
  #allocation1 [shape = 'u32[144,128]{1,0:T(1,128)}', space=vmem, size = 0x12000, scoped, tag = 'internal scratch']
  #allocation2 [shape = 'f32[4,8,128]{2,1,0:T(8,128)}', space=vmem, size = 0x4000, scoped, tag = 'scratch operand']
  #allocation3 [shape = 'f32[4,8,128]{2,1,0:T(8,128)}', space=vmem, size = 0x4000, scoped, tag = 'scratch operand']
  #allocation4 [shape = 'f32[4,8,128]{2,1,0:T(8,128)}', space=vmem, size = 0x4000, scoped, tag = 'scratch operand']
  #allocation5 [shape = 'f32[8,128]{1,0:T(8,128)}', space=vmem, size = 0x1000, scoped, tag = 'scratch operand']
  %s0 = inlined_call_operand.hbm [shape: f32[2,4,32,128], index: 0, kind: input, shape index: {}]
  %s1 = inlined_call_operand.hbm [shape: s8[2,1,32,128], index: 1, kind: input, shape index: {}]
  %s2 = inlined_call_operand.hbm [shape: f32[1,2,4,8], index: 2, kind: output, shape index: {}]
  %s3 = sld [smem:[#allocation0]]
  $region57: #{tpu_custom_call.1} parent=0
    _
  %s5 = ssub.s32 1, %s3
  %s6 = scalar_select 0, %s5, %s3
  $region1: #{tpu_custom_call.1} parent=0
    #allocation6 [shape = 'u8[131072]{0}', space=vmem, size = 0x20000, scoped, tag = 'input window, operand 0']
    #allocation7 [shape = 's32[2]{0}', space=sflag, size = 0x8, scoped, tag = 'scoped memory for tpu_custom_call.1']
    #allocation8 [shape = 's32[2]{0}', space=sflag, size = 0x8, scoped, tag = 'scoped memory for tpu_custom_call.1']
    #allocation9 [shape = 'u8[8192]{0}', space=vmem, size = 0x2000, scoped, tag = 'input window, operand 1']
    #allocation10 [shape = 's32[2]{0}', space=sflag, size = 0x8, scoped, tag = 'scoped memory for tpu_custom_call.1']
    #allocation11 [shape = 'u8[4096]{0}', space=vmem, size = 0x1000, scoped, tag = 'output window, operand 0']
    %7 = vsyncpa [#allocation7], 0
    %s8 = scalar_lea.sflag [#allocation7], 1
    %9 = vsyncpa %s8, 0
    %10 = vsyncpa [#allocation10], 0
    %s11 = scalar_lea.sflag [#allocation10], 1
    %12 = vsyncpa %s11, 0
    %13 = vsyncpa [#allocation8], 0
    %s14 = scalar_lea.sflag [#allocation8], 1
    %15 = vsyncpa %s14, 0
    loop: start=0, step=1, limit=4
    $region2: #{tpu_custom_call.1} parent=1 // loop_pre_header
      _
    $region3: #{tpu_custom_call.1} parent=1 // loop_header
      %s17 = sphi 0, %s21
      %p18 = scmp.ge.s32.totalorder %s17, 4
      %s24 = sphi 0, %s43
      %s25 = sphi 0, %s39
      %s26 = sphi 0, %s35
      %s27 = sphi 0, %s24
      %s28 = sphi 0, %s25
      %s29 = sphi 0, %s26
      %s30 = sphi 0, %s27
      %s31 = sphi 0, %s28
      %s32 = sphi 0, %s29
      %s50 = sphi 0, %s52
      %s53 = sphi 0, %s50
      %s54 = sphi 0, %s53
      %s70 = sphi 0, %s54
      %s80 = sphi 0, %s82
      %s83 = sphi 0, %s80
      %s84 = sphi 0, %s83
      %s100 = sphi 0, %s84
      %s108 = sphi 0, %s110
      %s111 = sphi 0, %s108
      %s112 = sphi 0, %s111
      %s128 = sphi 0, %s112
    $region4: #{tpu_custom_call.1} parent=1 // loop_header_branch
      %20 = sbr.rel (%p18) target = $region8
    $region5: #{tpu_custom_call.1} parent=1 // loop_body
      %s22 = ssub.s32 %s17, 1
      %s23 = ssub.s32 %s17, 2
      %s33 = sadd.s32 1, %s26
      %p34 = scmp.ge.s32.totalorder %s33, 1
      %s35 = scalar_select %p34, 0, %s33
      %s36 = sadd.s32 1, %s25
      %s37 = scalar_select %p34, %s36, %s25
      %p38 = scmp.ge.s32.totalorder %s37, 2
      %s39 = scalar_select %p38, 0, %s37
      %s40 = sadd.s32 1, %s24
      %s41 = scalar_select %p38, %s40, %s24
      %p42 = scmp.ge.s32.totalorder %s41, 1
      %s43 = scalar_select %p42, 0, %s41
      %s44 = sadd.s32 %s24, %s26
      %s45 = sadd.s32 %s43, %s35
      %s46 = ssub.s32 %s25, %s39
      %s47 = ssub.s32 %s44, %s45
      %s48 = sor.u32 %s46, %s47
      %p49 = scmp.eq.s32.totalorder %s48, 0
      %s51 = sadd.s32 %s50, 1
      %s52 = scalar_select %p49, %s50, %s51
      %p55 = pneg %p49
      %p56 = scmp.eq.s32.totalorder %s17, 1
      %p57 = por %p55, %p56
      %p58 = scmp.ne.s32.totalorder %s50, %s53
      %p59 = scmp.eq.s32.totalorder %s17, 0
      %p60 = por %p58, %p59
      %p61 = scmp.ne.s32.totalorder %s50, %s53
      %p62 = scmp.eq.s32.totalorder %s22, 1
      %p63 = por %p61, %p62
      %p64 = scmp.ne.s32.totalorder %s53, %s54
      %p65 = scmp.eq.s32.totalorder %s22, 0
      %p66 = por %p64, %p65
      %p67 = scmp.ne.s32.totalorder %s53, %s54
      %p68 = scmp.eq.s32.totalorder %s23, 1
      %p69 = por %p67, %p68
      %p71 = scmp.ne.s32.totalorder %s54, %s70
      %p72 = scmp.eq.s32.totalorder %s23, 0
      %p73 = por %p71, %p72
      %s74 = sadd.s32 %s24, %s26
      %s75 = sadd.s32 %s43, %s35
      %s76 = ssub.s32 %s25, %s39
      %s77 = ssub.s32 %s74, %s75
      %s78 = sor.u32 %s76, %s77
      %p79 = scmp.eq.s32.totalorder %s78, 0
      %s81 = sadd.s32 %s80, 1
      %s82 = scalar_select %p79, %s80, %s81
      %p85 = pneg %p79
      %p86 = scmp.eq.s32.totalorder %s17, 1
      %p87 = por %p85, %p86
      %p88 = scmp.ne.s32.totalorder %s80, %s83
      %p89 = scmp.eq.s32.totalorder %s17, 0
      %p90 = por %p88, %p89
      %p91 = scmp.ne.s32.totalorder %s80, %s83
      %p92 = scmp.eq.s32.totalorder %s22, 1
      %p93 = por %p91, %p92
      %p94 = scmp.ne.s32.totalorder %s83, %s84
      %p95 = scmp.eq.s32.totalorder %s22, 0
      %p96 = por %p94, %p95
      %p97 = scmp.ne.s32.totalorder %s83, %s84
      %p98 = scmp.eq.s32.totalorder %s23, 1
      %p99 = por %p97, %p98
      %p101 = scmp.ne.s32.totalorder %s84, %s100
      %p102 = scmp.eq.s32.totalorder %s23, 0
      %p103 = por %p101, %p102
      %s104 = ssub.s32 %s24, %s43
      %s105 = ssub.s32 %s25, %s39
      %s106 = sor.u32 %s104, %s105
      %p107 = scmp.eq.s32.totalorder %s106, 0
      %s109 = sadd.s32 %s108, 1
      %s110 = scalar_select %p107, %s108, %s109
      %p113 = pneg %p107
      %p114 = scmp.eq.s32.totalorder %s17, 1
      %p115 = por %p113, %p114
      %p116 = scmp.ne.s32.totalorder %s108, %s111
      %p117 = scmp.eq.s32.totalorder %s17, 0
      %p118 = por %p116, %p117
      %p119 = scmp.ne.s32.totalorder %s108, %s111
      %p120 = scmp.eq.s32.totalorder %s22, 1
      %p121 = por %p119, %p120
      %p122 = scmp.ne.s32.totalorder %s111, %s112
      %p123 = scmp.eq.s32.totalorder %s22, 0
      %p124 = por %p122, %p123
      %p125 = scmp.ne.s32.totalorder %s111, %s112
      %p126 = scmp.eq.s32.totalorder %s23, 1
      %p127 = por %p125, %p126
      %p129 = scmp.ne.s32.totalorder %s112, %s128
      %p130 = scmp.eq.s32.totalorder %s23, 0
      %p131 = por %p129, %p130
      %p132 = scmp.le.s32.totalorder 1, %s17
      %p133 = scmp.lt.s32.totalorder %s17, 3
      %p134 = pnand %p132, %p133
      %p135 = pneg %p134
      // Predicated region
      $region9: #{tpu_custom_call.1} parent=5 // pred_check
        _
      $region10: #{tpu_custom_call.1} parent=5 // pred_check_branch
        %137 = sbr.rel (%p134) target = $region12
      $region11: #{tpu_custom_call.1} parent=5 // pred_region
        %s138 = ssub.s32 %s17, 1
      $region12: #{tpu_custom_call.1} parent=5 // pred_fallthru
        _
      %p139 = scmp.lt.s32.totalorder %s17, 2
      // Predicated region
      $region13: #{tpu_custom_call.1} parent=5 // pred_check
        %p140 = pneg %p139
      $region14: #{tpu_custom_call.1} parent=5 // pred_check_branch
        %142 = sbr.rel (%p140) target = $region16
      $region15: #{tpu_custom_call.1} parent=5 // pred_region
        // Predicated region
        $region17: #{tpu_custom_call.1} parent=15 // pred_check
          %p143 = pneg %p60
        $region18: #{tpu_custom_call.1} parent=15 // pred_check_branch
          %145 = sbr.rel (%p143) target = $region20
        $region19: #{tpu_custom_call.1} parent=15 // pred_region
          %s146 = sand.u32 %s50, 1
          %s147 = scalar_lea.sflag [#allocation7], %s146
          %s148 = sand.u32 %s50, 1
          %s149 = smul.addr %s148, 128
          %s150 = scalar_lea.vmem [#allocation6], %s149
          %s151 = sadd.s32 %s24, %s26
          %s152 = smul.u32 4, %s151
          %s154 = ssub.s32 2048, 2048
          %155 = vsyncadd %s147, %s154
          %s156 = smul.addr %s25, 16
          %s157 = sadd.s32 %s152, %s156
          %s158 = smul.addr %s157, 128
          %s159 = scalar_lea.hbm %s0, %s158
          %s160 = sshll.u32 %s150, 4
          %s161 = int_to_ptr.vmem [resolvable:$true] %s160
          %166 = dma.hbm_to_vmem [thread:$0]  %s159, 2048, %s161, %s147, 128, 128, 8
        $region20: #{tpu_custom_call.1} parent=15 // pred_fallthru
          _
        // Predicated region
        $region21: #{tpu_custom_call.1} parent=15 // pred_check
          %p167 = pneg %p90
        $region22: #{tpu_custom_call.1} parent=15 // pred_check_branch
          %169 = sbr.rel (%p167) target = $region24
        $region23: #{tpu_custom_call.1} parent=15 // pred_region
          %s170 = sand.u32 %s80, 1
          %s171 = scalar_lea.sflag [#allocation10], %s170
          %s172 = sand.u32 %s80, 1
          %s173 = smul.addr %s172, 8
          %s174 = scalar_lea.vmem [#allocation9], %s173
          %s175 = sadd.s32 %s24, %s26
          %s177 = ssub.s32 128, 128
          %178 = vsyncadd %s171, %s177
          %s179 = sadd.s32 %s175, %s25
          %s180 = smul.addr %s179, 128
          %s181 = scalar_lea.hbm %s1, %s180
          %s183 = sshll.u32 %s174, 4
          %s184 = int_to_ptr.vmem [resolvable:$true] %s183
          %186 = dma.hbm_to_vmem [thread:$0]  %s181, 128, %s184, %s171
        $region24: #{tpu_custom_call.1} parent=15 // pred_fallthru
          _
      $region16: #{tpu_custom_call.1} parent=5 // pred_fallthru
        _
      %p187 = scmp.le.s32.totalorder 1, %s17
      %p188 = scmp.lt.s32.totalorder %s17, 3
      %p189 = pnand %p187, %p188
      %p190 = pneg %p189
      // Predicated region
      $region25: #{tpu_custom_call.1} parent=5 // pred_check
        _
      $region26: #{tpu_custom_call.1} parent=5 // pred_check_branch
        %192 = sbr.rel (%p189) target = $region28
      $region27: #{tpu_custom_call.1} parent=5 // pred_region
        %s193 = ssub.s32 %s17, 1
        %s194 = sand.u32 %s53, 1
        %s195 = scalar_lea.sflag [#allocation7], %s194
        %s196 = sand.u32 %s53, 1
        %s197 = smul.addr %s196, 128
        %s198 = scalar_lea.vmem [#allocation6], %s197
        // Predicated region
        $region29: #{tpu_custom_call.1} parent=27 // pred_check
          %p199 = pneg %p66
        $region30: #{tpu_custom_call.1} parent=27 // pred_check_branch
          %201 = sbr.rel (%p199) target = $region32
        $region31: #{tpu_custom_call.1} parent=27 // pred_region
          %202 = dma.done %s195, 2048
        $region32: #{tpu_custom_call.1} parent=27 // pred_fallthru
          _
        %s203 = sand.u32 %s83, 1
        %s204 = scalar_lea.sflag [#allocation10], %s203
        %s205 = sand.u32 %s83, 1
        %s206 = smul.addr %s205, 8
        %s207 = scalar_lea.vmem [#allocation9], %s206
        // Predicated region
        $region33: #{tpu_custom_call.1} parent=27 // pred_check
          %p208 = pneg %p96
        $region34: #{tpu_custom_call.1} parent=27 // pred_check_branch
          %210 = sbr.rel (%p208) target = $region36
        $region35: #{tpu_custom_call.1} parent=27 // pred_region
          %211 = dma.done %s204, 128
        $region36: #{tpu_custom_call.1} parent=27 // pred_fallthru
          _
        %s212 = sand.u32 %s53, 1
        %s213 = scalar_lea.sflag [#allocation7], %s212
        %s214 = sand.u32 %s53, 1
        %s215 = smul.addr %s214, 128
        %s216 = scalar_lea.vmem [#allocation6], %s215
        %p217 = pneg %p66
        %p218 = pneg %p63
        %s219 = sand.u32 %s83, 1
        %s220 = scalar_lea.sflag [#allocation10], %s219
        %s221 = sand.u32 %s83, 1
        %s222 = smul.addr %s221, 8
        %s223 = scalar_lea.vmem [#allocation9], %s222
        %p224 = pneg %p96
        %p225 = pneg %p93
        %p226 = pneg %p124
        %p227 = pneg %p121
        %s228 = sand.u32 %s111, 1
        %s229 = scalar_lea.sflag [#allocation8], %s228
        %s230 = sand.u32 %s111, 1
        %s231 = smul.addr %s230, 4
        %s232 = scalar_lea.vmem [#allocation11], %s231
        %s233 = sadd.s32 %s27, %s29
        %s234 = smul.u32 4, %s233
        %s235 = sadd.s32 %s27, %s29
        %p236 = scmp.eq.s32.totalorder %s29, 0
        // Predicated region
        $region37: #{tpu_custom_call.1} parent=27 // pred_check
          %p237 = pneg %p236
        $region38: #{tpu_custom_call.1} parent=27 // pred_check_branch
          %239 = sbr.rel (%p237) target = $region40
        $region39: #{tpu_custom_call.1} parent=27 // pred_region
          %240 = vst [vmem:[#allocation2] sm:$0xff] 0.0
          %241 = vst [vmem:[#allocation2 + $0x8] sm:$0xff] 0.0
          %242 = vst [vmem:[#allocation2 + $0x10] sm:$0xff] 0.0
          %243 = vst [vmem:[#allocation2 + $0x18] sm:$0xff] 0.0
          %244 = vst [vmem:[#allocation3] sm:$0xff] 0.0
          %245 = vst [vmem:[#allocation3 + $0x8] sm:$0xff] 0.0
          %246 = vst [vmem:[#allocation3 + $0x10] sm:$0xff] 0.0
          %247 = vst [vmem:[#allocation3 + $0x18] sm:$0xff] 0.0
          %248 = vst [vmem:[#allocation4] sm:$0xff] 0.0
          %249 = vst [vmem:[#allocation4 + $0x8] sm:$0xff] 0.0
          %250 = vst [vmem:[#allocation4 + $0x10] sm:$0xff] 0.0
          %251 = vst [vmem:[#allocation4 + $0x18] sm:$0xff] 0.0
          %252 = vst [vmem:[#allocation5] sm:$0xff] 0.0
        $region40: #{tpu_custom_call.1} parent=27 // pred_fallthru
          _
        %v253 = vld [vmem:[%s198] sm:$0xff]
        %v254 = vld [vmem:[%s198 + $0x8] sm:$0xff]
        %v255 = vld [vmem:[%s198 + $0x10] sm:$0xff]
        %v256 = vld [vmem:[%s198 + $0x18] sm:$0xff]
        %s257 = scalar_lea.vmem %s198, 32 [#allocation6]
        %v258 = vld [vmem:[%s257] sm:$0xff]
        %v259 = vld [vmem:[%s257 + $0x8] sm:$0xff]
        %v260 = vld [vmem:[%s257 + $0x10] sm:$0xff]
        %v261 = vld [vmem:[%s257 + $0x18] sm:$0xff]
        %s262 = scalar_lea.vmem %s198, 64 [#allocation6]
        %v263 = vld [vmem:[%s262] sm:$0xff]
        %v264 = vld [vmem:[%s262 + $0x8] sm:$0xff]
        %v265 = vld [vmem:[%s262 + $0x10] sm:$0xff]
        %v266 = vld [vmem:[%s262 + $0x18] sm:$0xff]
        %s267 = scalar_lea.vmem %s198, 96 [#allocation6]
        %v268 = vld [vmem:[%s267] sm:$0xff]
        %v269 = vld [vmem:[%s267 + $0x8] sm:$0xff]
        %v270 = vld [vmem:[%s267 + $0x10] sm:$0xff]
        %v271 = vld [vmem:[%s267 + $0x18] sm:$0xff]
        %v272 = vld [vmem:[%s207] sm:$0xff]
        %v273 = vunpack.c.0.s8 %v272
        %v274 = vunpack.c.1.s8 %v272
        %v275 = vunpack.c.2.s8 %v272
        %v276 = vunpack.c.3.s8 %v272
        %v277 = vmax.f32 %v253, %v258
        %v278 = vmax.f32 %v254, %v259
        %v279 = vmax.f32 %v255, %v260
        %v280 = vmax.f32 %v256, %v261
        %v281 = vmax.f32 %v277, %v263
        %v282 = vmax.f32 %v278, %v264
        %v283 = vmax.f32 %v279, %v265
        %v284 = vmax.f32 %v280, %v266
        %v285 = vmax.f32 %v281, %v268
        %v286 = vmax.f32 %v282, %v269
        %v287 = vmax.f32 %v283, %v270
        %v288 = vmax.f32 %v284, %v271
        %v289 = vsub.f32 %v253, %v285
        %v290 = vsub.f32 %v254, %v286
        %v291 = vsub.f32 %v255, %v287
        %v292 = vsub.f32 %v256, %v288
        %v293 = vmul.f32 %v289, 1.442695
        %v294 = vpow.pop %v293
        %v295 = vmul.f32 %v290, 1.442695
        %v296 = vpow.pop %v295
        %v297 = vmul.f32 %v291, 1.442695
        %v298 = vpow.pop %v297
        %v299 = vmul.f32 %v292, 1.442695
        %v300 = vpow.pop %v299
        %v301 = vsub.f32 %v258, %v285
        %v302 = vsub.f32 %v259, %v286
        %v303 = vsub.f32 %v260, %v287
        %v304 = vsub.f32 %v261, %v288
        %v305 = vmul.f32 %v301, 1.442695
        %v306 = vpow.pop %v305
        %v307 = vmul.f32 %v302, 1.442695
        %v308 = vpow.pop %v307
        %v309 = vmul.f32 %v303, 1.442695
        %v310 = vpow.pop %v309
        %v311 = vmul.f32 %v304, 1.442695
        %v312 = vpow.pop %v311
        %v313 = vsub.f32 %v263, %v285
        %v314 = vsub.f32 %v264, %v286
        %v315 = vsub.f32 %v265, %v287
        %v316 = vsub.f32 %v266, %v288
        %v317 = vmul.f32 %v313, 1.442695
        %v318 = vpow.pop %v317
        %v319 = vmul.f32 %v314, 1.442695
        %v320 = vpow.pop %v319
        %v321 = vmul.f32 %v315, 1.442695
        %v322 = vpow.pop %v321
        %v323 = vmul.f32 %v316, 1.442695
        %v324 = vpow.pop %v323
        %v325 = vsub.f32 %v268, %v285
        %v326 = vsub.f32 %v269, %v286
        %v327 = vsub.f32 %v270, %v287
        %v328 = vsub.f32 %v271, %v288
        %v329 = vmul.f32 %v325, 1.442695
        %v330 = vpow.pop %v329
        %v331 = vmul.f32 %v326, 1.442695
        %v332 = vpow.pop %v331
        %v333 = vmul.f32 %v327, 1.442695
        %v334 = vpow.pop %v333
        %v335 = vmul.f32 %v328, 1.442695
        %v336 = vpow.pop %v335
        %v337 = vadd.f32 %v294, %v306
        %v338 = vadd.f32 %v296, %v308
        %v339 = vadd.f32 %v298, %v310
        %v340 = vadd.f32 %v300, %v312
        %v341 = vadd.f32 %v337, %v318
        %v342 = vadd.f32 %v338, %v320
        %v343 = vadd.f32 %v339, %v322
        %v344 = vadd.f32 %v340, %v324
        %v345 = vadd.f32 %v341, %v330
        %v346 = vadd.f32 %v342, %v332
        %v347 = vadd.f32 %v343, %v334
        %v348 = vadd.f32 %v344, %v336
        %v349 = vrcp.pop %v345
        %v350 = vrcp.pop %v346
        %v351 = vrcp.pop %v347
        %v352 = vrcp.pop %v348
        %v353 = vmul.f32 %v345, %v349
        %v354 = vmul.f32 %v346, %v350
        %v355 = vmul.f32 %v347, %v351
        %v356 = vmul.f32 %v348, %v352
        %v357 = vsub.f32 2.0, %v353
        %v358 = vsub.f32 2.0, %v354
        %v359 = vsub.f32 2.0, %v355
        %v360 = vsub.f32 2.0, %v356
        %v361 = vmul.f32 %v349, %v357
        %v362 = vmul.f32 %v350, %v358
        %v363 = vmul.f32 %v351, %v359
        %v364 = vmul.f32 %v352, %v360
        %vm365 = vcmp.eq.s32.totalorder %v273, 0
        %vm366 = vcmp.eq.s32.totalorder %v274, 0
        %vm367 = vcmp.eq.s32.totalorder %v275, 0
        %vm368 = vcmp.eq.s32.totalorder %v276, 0
        %v369 = vmul.f32 %v294, %v361
        %v370 = vmul.f32 %v296, %v362
        %v371 = vmul.f32 %v298, %v363
        %v372 = vmul.f32 %v300, %v364
        %v373 = vld [vmem:[#allocation2] sm:$0xff]
        %v374 = vsel %vm365, %v369, 0.0
        %v375 = vsel %vm366, %v370, 0.0
        %v376 = vsel %vm367, %v371, 0.0
        %v377 = vsel %vm368, %v372, 0.0
        %v378 = vadd.f32 %v374, %v375
        %v379 = vadd.f32 %v378, %v376
        %v380 = vadd.f32 %v379, %v377
        %v381 = vadd.f32 %v373, %v380
        %382 = vst [vmem:[#allocation2] sm:$0xff] %v381
        %v383 = vld [vmem:[#allocation3] sm:$0xff]
        %v384 = vadd.f32 %v369, %v370
        %v385 = vadd.f32 %v384, %v371
        %v386 = vadd.f32 %v385, %v372
        %v387 = vadd.f32 %v383, %v386
        %388 = vst [vmem:[#allocation3] sm:$0xff] %v387
        %v389 = vld [vmem:[#allocation4] sm:$0xff]
        %v390 = vsel %vm365, 1.0, 0.0
        %v391 = vsel %vm366, 1.0, 0.0
        %v392 = vsel %vm367, 1.0, 0.0
        %v393 = vsel %vm368, 1.0, 0.0
        %v394 = vadd.f32 %v390, %v391
        %v395 = vadd.f32 %v394, %v392
        %v396 = vadd.f32 %v395, %v393
        %v397 = vadd.f32 %v389, %v396
        %398 = vst [vmem:[#allocation4] sm:$0xff] %v397
        %v399 = vsel %vm365, %v253, 0.0
        %v400 = vsel %vm366, %v254, 0.0
        %v401 = vsel %vm367, %v255, 0.0
        %v402 = vsel %vm368, %v256, 0.0
        %vm403 = vcmp.eq.s32.totalorder %v273, 1
        %vm404 = vcmp.eq.s32.totalorder %v274, 1
        %vm405 = vcmp.eq.s32.totalorder %v275, 1
        %vm406 = vcmp.eq.s32.totalorder %v276, 1
        %v407 = vmul.f32 %v306, %v361
        %v408 = vmul.f32 %v308, %v362
        %v409 = vmul.f32 %v310, %v363
        %v410 = vmul.f32 %v312, %v364
        %s411 = scalar_lea.vmem [#allocation2], 8
        %v412 = vld [vmem:[%s411] sm:$0xff]
        %v413 = vsel %vm403, %v407, 0.0
        %v414 = vsel %vm404, %v408, 0.0
        %v415 = vsel %vm405, %v409, 0.0
        %v416 = vsel %vm406, %v410, 0.0
        %v417 = vadd.f32 %v413, %v414
        %v418 = vadd.f32 %v417, %v415
        %v419 = vadd.f32 %v418, %v416
        %v420 = vadd.f32 %v412, %v419
        %421 = vst [vmem:[%s411] sm:$0xff] %v420
        %s422 = scalar_lea.vmem [#allocation3], 8
        %v423 = vld [vmem:[%s422] sm:$0xff]
        %v424 = vadd.f32 %v407, %v408
        %v425 = vadd.f32 %v424, %v409
        %v426 = vadd.f32 %v425, %v410
        %v427 = vadd.f32 %v423, %v426
        %428 = vst [vmem:[%s422] sm:$0xff] %v427
        %s429 = scalar_lea.vmem [#allocation4], 8
        %v430 = vld [vmem:[%s429] sm:$0xff]
        %v431 = vsel %vm403, 1.0, 0.0
        %v432 = vsel %vm404, 1.0, 0.0
        %v433 = vsel %vm405, 1.0, 0.0
        %v434 = vsel %vm406, 1.0, 0.0
        %v435 = vadd.f32 %v431, %v432
        %v436 = vadd.f32 %v435, %v433
        %v437 = vadd.f32 %v436, %v434
        %v438 = vadd.f32 %v430, %v437
        %439 = vst [vmem:[%s429] sm:$0xff] %v438
        %v440 = vsel %vm403, %v258, 0.0
        %v441 = vsel %vm404, %v259, 0.0
        %v442 = vsel %vm405, %v260, 0.0
        %v443 = vsel %vm406, %v261, 0.0
        %v444 = vadd.f32 %v399, %v440
        %v445 = vadd.f32 %v400, %v441
        %v446 = vadd.f32 %v401, %v442
        %v447 = vadd.f32 %v402, %v443
        %vm448 = vcmp.eq.s32.totalorder %v273, 2
        %vm449 = vcmp.eq.s32.totalorder %v274, 2
        %vm450 = vcmp.eq.s32.totalorder %v275, 2
        %vm451 = vcmp.eq.s32.totalorder %v276, 2
        %v452 = vmul.f32 %v318, %v361
        %v453 = vmul.f32 %v320, %v362
        %v454 = vmul.f32 %v322, %v363
        %v455 = vmul.f32 %v324, %v364
        %s456 = scalar_lea.vmem [#allocation2], 16
        %v457 = vld [vmem:[%s456] sm:$0xff]
        %v458 = vsel %vm448, %v452, 0.0
        %v459 = vsel %vm449, %v453, 0.0
        %v460 = vsel %vm450, %v454, 0.0
        %v461 = vsel %vm451, %v455, 0.0
        %v462 = vadd.f32 %v458, %v459
        %v463 = vadd.f32 %v462, %v460
        %v464 = vadd.f32 %v463, %v461
        %v465 = vadd.f32 %v457, %v464
        %466 = vst [vmem:[%s456] sm:$0xff] %v465
        %s467 = scalar_lea.vmem [#allocation3], 16
        %v468 = vld [vmem:[%s467] sm:$0xff]
        %v469 = vadd.f32 %v452, %v453
        %v470 = vadd.f32 %v469, %v454
        %v471 = vadd.f32 %v470, %v455
        %v472 = vadd.f32 %v468, %v471
        %473 = vst [vmem:[%s467] sm:$0xff] %v472
        %s474 = scalar_lea.vmem [#allocation4], 16
        %v475 = vld [vmem:[%s474] sm:$0xff]
        %v476 = vsel %vm448, 1.0, 0.0
        %v477 = vsel %vm449, 1.0, 0.0
        %v478 = vsel %vm450, 1.0, 0.0
        %v479 = vsel %vm451, 1.0, 0.0
        %v480 = vadd.f32 %v476, %v477
        %v481 = vadd.f32 %v480, %v478
        %v482 = vadd.f32 %v481, %v479
        %v483 = vadd.f32 %v475, %v482
        %484 = vst [vmem:[%s474] sm:$0xff] %v483
        %v485 = vsel %vm448, %v263, 0.0
        %v486 = vsel %vm449, %v264, 0.0
        %v487 = vsel %vm450, %v265, 0.0
        %v488 = vsel %vm451, %v266, 0.0
        %v489 = vadd.f32 %v444, %v485
        %v490 = vadd.f32 %v445, %v486
        %v491 = vadd.f32 %v446, %v487
        %v492 = vadd.f32 %v447, %v488
        %vm493 = vcmp.eq.s32.totalorder %v273, 3
        %vm494 = vcmp.eq.s32.totalorder %v274, 3
        %vm495 = vcmp.eq.s32.totalorder %v275, 3
        %vm496 = vcmp.eq.s32.totalorder %v276, 3
        %v497 = vmul.f32 %v330, %v361
        %v498 = vmul.f32 %v332, %v362
        %v499 = vmul.f32 %v334, %v363
        %v500 = vmul.f32 %v336, %v364
        %s501 = scalar_lea.vmem [#allocation2], 24
        %v502 = vld [vmem:[%s501] sm:$0xff]
        %v503 = vsel %vm493, %v497, 0.0
        %v504 = vsel %vm494, %v498, 0.0
        %v505 = vsel %vm495, %v499, 0.0
        %v506 = vsel %vm496, %v500, 0.0
        %v507 = vadd.f32 %v503, %v504
        %v508 = vadd.f32 %v507, %v505
        %v509 = vadd.f32 %v508, %v506
        %v510 = vadd.f32 %v502, %v509
        %511 = vst [vmem:[%s501] sm:$0xff] %v510
        %s512 = scalar_lea.vmem [#allocation3], 24
        %v513 = vld [vmem:[%s512] sm:$0xff]
        %v514 = vadd.f32 %v497, %v498
        %v515 = vadd.f32 %v514, %v499
        %v516 = vadd.f32 %v515, %v500
        %v517 = vadd.f32 %v513, %v516
        %518 = vst [vmem:[%s512] sm:$0xff] %v517
        %s519 = scalar_lea.vmem [#allocation4], 24
        %v520 = vld [vmem:[%s519] sm:$0xff]
        %v521 = vsel %vm493, 1.0, 0.0
        %v522 = vsel %vm494, 1.0, 0.0
        %v523 = vsel %vm495, 1.0, 0.0
        %v524 = vsel %vm496, 1.0, 0.0
        %v525 = vadd.f32 %v521, %v522
        %v526 = vadd.f32 %v525, %v523
        %v527 = vadd.f32 %v526, %v524
        %v528 = vadd.f32 %v520, %v527
        %529 = vst [vmem:[%s519] sm:$0xff] %v528
        %v530 = vsel %vm493, %v268, 0.0
        %v531 = vsel %vm494, %v269, 0.0
        %v532 = vsel %vm495, %v270, 0.0
        %v533 = vsel %vm496, %v271, 0.0
        %v534 = vadd.f32 %v489, %v530
        %v535 = vadd.f32 %v490, %v531
        %v536 = vadd.f32 %v491, %v532
        %v537 = vadd.f32 %v492, %v533
        %v538 = vlog2.pop %v345
        %v539 = vmul.f32 %v538, 0.6931472
        %v540 = vlog2.pop %v346
        %v541 = vmul.f32 %v540, 0.6931472
        %v542 = vlog2.pop %v347
        %v543 = vmul.f32 %v542, 0.6931472
        %v544 = vlog2.pop %v348
        %v545 = vmul.f32 %v544, 0.6931472
        %v546 = vadd.f32 %v285, %v539
        %v547 = vadd.f32 %v286, %v541
        %v548 = vadd.f32 %v287, %v543
        %v549 = vadd.f32 %v288, %v545
        %v550 = vld [vmem:[#allocation5] sm:$0xff]
        %v551 = vsub.f32 %v546, %v534
        %v552 = vsub.f32 %v547, %v535
        %v553 = vsub.f32 %v548, %v536
        %v554 = vsub.f32 %v549, %v537
        %v555 = vadd.f32 %v551, %v552
        %v556 = vadd.f32 %v555, %v553
        %v557 = vadd.f32 %v556, %v554
        %v558 = vadd.f32 %v550, %v557
        %559 = vst [vmem:[#allocation5] sm:$0xff] %v558
        // Predicated region
        $region41: #{tpu_custom_call.1} parent=27 // pred_check
          %p560 = pneg %p236
        $region42: #{tpu_custom_call.1} parent=27 // pred_check_branch
          %562 = sbr.rel (%p560) target = $region44
        $region43: #{tpu_custom_call.1} parent=27 // pred_region
          %v563 = vld [vmem:[#allocation2] sm:$0xff]
          %v564 = vld [vmem:[#allocation2 + $0x8] sm:$0xff]
          %v565 = vld [vmem:[#allocation2 + $0x10] sm:$0xff]
          %v566 = vld [vmem:[#allocation2 + $0x18] sm:$0xff]
          %v567 = vrot.slane %v563, 4
          %v568 = vadd.f32 %v563, %v567
          %v569 = vrot.slane %v568, 2
          %v570 = vadd.f32 %v568, %v569
          %v571 = vrot.slane %v570, 1
          %v572 = vadd.f32 %v570, %v571
          %v573 = vrot.slane %v564, 4
          %v574 = vadd.f32 %v564, %v573
          %v575 = vrot.slane %v574, 2
          %v576 = vadd.f32 %v574, %v575
          %v577 = vrot.slane %v576, 1
          %v578 = vadd.f32 %v576, %v577
          %v579 = vrot.slane %v565, 4
          %v580 = vadd.f32 %v565, %v579
          %v581 = vrot.slane %v580, 2
          %v582 = vadd.f32 %v580, %v581
          %v583 = vrot.slane %v582, 1
          %v584 = vadd.f32 %v582, %v583
          %v585 = vrot.slane %v566, 4
          %v586 = vadd.f32 %v566, %v585
          %v587 = vrot.slane %v586, 2
          %v588 = vadd.f32 %v586, %v587
          %v589 = vrot.slane %v588, 1
          %v590 = vadd.f32 %v588, %v589
          %vm595 = vcmask 1041409
          %v596 = vsel %vm595, %v578, %v572
          %vm597 = vcmask 1042434
          %v598 = vsel %vm597, %v584, %v596
          %vm599 = vcmask 1043459
          %v600 = vsel %vm599, %v590, %v598
          %vm602 = vcmask 1043456
          %v603 = vsel %vm602, %v600, 0.0
          %604 = vadd.xlane.f32.xlu0 %v603
          %v605 = vpop.xlane.xlu0 %604
          %v606 = vld [vmem:[#allocation3] sm:$0xff]
          %v607 = vld [vmem:[#allocation3 + $0x8] sm:$0xff]
          %v608 = vld [vmem:[#allocation3 + $0x10] sm:$0xff]
          %v609 = vld [vmem:[#allocation3 + $0x18] sm:$0xff]
          %v610 = vrot.slane %v606, 4
          %v611 = vadd.f32 %v606, %v610
          %v612 = vrot.slane %v611, 2
          %v613 = vadd.f32 %v611, %v612
          %v614 = vrot.slane %v613, 1
          %v615 = vadd.f32 %v613, %v614
          %v616 = vrot.slane %v607, 4
          %v617 = vadd.f32 %v607, %v616
          %v618 = vrot.slane %v617, 2
          %v619 = vadd.f32 %v617, %v618
          %v620 = vrot.slane %v619, 1
          %v621 = vadd.f32 %v619, %v620
          %v622 = vrot.slane %v608, 4
          %v623 = vadd.f32 %v608, %v622
          %v624 = vrot.slane %v623, 2
          %v625 = vadd.f32 %v623, %v624
          %v626 = vrot.slane %v625, 1
          %v627 = vadd.f32 %v625, %v626
          %v628 = vrot.slane %v609, 4
          %v629 = vadd.f32 %v609, %v628
          %v630 = vrot.slane %v629, 2
          %v631 = vadd.f32 %v629, %v630
          %v632 = vrot.slane %v631, 1
          %v633 = vadd.f32 %v631, %v632
          %v638 = vsel %vm595, %v621, %v615
          %v639 = vsel %vm597, %v627, %v638
          %v640 = vsel %vm599, %v633, %v639
          %v642 = vsel %vm602, %v640, 0.0
          %643 = vadd.xlane.f32.xlu0 %v642
          %v644 = vpop.xlane.xlu0 %643
          %v645 = vld [vmem:[#allocation4] sm:$0xff]
          %v646 = vld [vmem:[#allocation4 + $0x8] sm:$0xff]
          %v647 = vld [vmem:[#allocation4 + $0x10] sm:$0xff]
          %v648 = vld [vmem:[#allocation4 + $0x18] sm:$0xff]
          %v649 = vrot.slane %v645, 4
          %v650 = vadd.f32 %v645, %v649
          %v651 = vrot.slane %v650, 2
          %v652 = vadd.f32 %v650, %v651
          %v653 = vrot.slane %v652, 1
          %v654 = vadd.f32 %v652, %v653
          %v655 = vrot.slane %v646, 4
          %v656 = vadd.f32 %v646, %v655
          %v657 = vrot.slane %v656, 2
          %v658 = vadd.f32 %v656, %v657
          %v659 = vrot.slane %v658, 1
          %v660 = vadd.f32 %v658, %v659
          %v661 = vrot.slane %v647, 4
          %v662 = vadd.f32 %v647, %v661
          %v663 = vrot.slane %v662, 2
          %v664 = vadd.f32 %v662, %v663
          %v665 = vrot.slane %v664, 1
          %v666 = vadd.f32 %v664, %v665
          %v667 = vrot.slane %v648, 4
          %v668 = vadd.f32 %v648, %v667
          %v669 = vrot.slane %v668, 2
          %v670 = vadd.f32 %v668, %v669
          %v671 = vrot.slane %v670, 1
          %v672 = vadd.f32 %v670, %v671
          %v677 = vsel %vm595, %v660, %v654
          %v678 = vsel %vm597, %v666, %v677
          %v679 = vsel %vm599, %v672, %v678
          %v681 = vsel %vm602, %v679, 0.0
          %682 = vadd.xlane.f32.xlu0 %v681
          %v683 = vpop.xlane.xlu0 %682
          %v684 = vld [vmem:[#allocation5] sm:$0xff]
          %v685 = vrot.slane %v684, 4
          %v686 = vadd.f32 %v684, %v685
          %v687 = vrot.slane %v686, 2
          %v688 = vadd.f32 %v686, %v687
          %v689 = vrot.slane %v688, 1
          %v690 = vadd.f32 %v688, %v689
          %691 = vadd.xlane.f32.xlu0 %v690
          %v692 = vpop.xlane.xlu0 %691
          %vm693 = vcmask 7168
          %v694 = vsel %vm693, %v605, %v644
          %vm695 = vcmask 15360
          %v696 = vsel %vm695, %v694, %v683
          %vm697 = vcmask 23552
          %v698 = vsel %vm697, %v696, %v692
          %vm699 = vcmask 31744
          %v700 = vsel %vm699, %v698, 0.0
          %vm701 = vcmask 60416
          %702 = vst.msk [vmem:[%s232] sm:$0xf] %vm701, %v700
        $region44: #{tpu_custom_call.1} parent=27 // pred_fallthru
          _
        %s703 = sand.u32 %s111, 1
        %s704 = scalar_lea.sflag [#allocation8], %s703
        %s705 = sand.u32 %s111, 1
        %s706 = smul.addr %s705, 4
        %s707 = scalar_lea.vmem [#allocation11], %s706
        // Predicated region
        $region45: #{tpu_custom_call.1} parent=27 // pred_check
          %p708 = pneg %p121
        $region46: #{tpu_custom_call.1} parent=27 // pred_check_branch
          %710 = sbr.rel (%p708) target = $region48
        $region47: #{tpu_custom_call.1} parent=27 // pred_region
          %s712 = ssub.s32 64, 64
          %713 = vsyncadd %s704, %s712
          %s714 = smul.addr %s27, 2
          %s715 = sadd.s32 %s28, %s714
          %s716 = smul.addr %s715, 64
          %s717 = scalar_lea.hbm %s2, %s716
          %s719 = sshll.u32 %s707, 4
          %s720 = int_to_ptr.vmem [resolvable:$true] %s719
          %722 = dma.vmem_to_hbm [thread:$0]  %s720, 64, %s717, %s704
        $region48: #{tpu_custom_call.1} parent=27 // pred_fallthru
          _
      $region28: #{tpu_custom_call.1} parent=5 // pred_fallthru
        _
      %p723 = scmp.le.s32.totalorder 2, %s17
      // Predicated region
      $region49: #{tpu_custom_call.1} parent=5 // pred_check
        %p724 = pneg %p723
      $region50: #{tpu_custom_call.1} parent=5 // pred_check_branch
        %726 = sbr.rel (%p724) target = $region52
      $region51: #{tpu_custom_call.1} parent=5 // pred_region
        %s727 = ssub.s32 %s17, 2
        // Predicated region
        $region53: #{tpu_custom_call.1} parent=51 // pred_check
          %p728 = pneg %p127
        $region54: #{tpu_custom_call.1} parent=51 // pred_check_branch
          %730 = sbr.rel (%p728) target = $region56
        $region55: #{tpu_custom_call.1} parent=51 // pred_region
          %s731 = sand.u32 %s112, 1
          %s732 = scalar_lea.sflag [#allocation8], %s731
          %s733 = sand.u32 %s112, 1
          %s734 = smul.addr %s733, 4
          %s735 = scalar_lea.vmem [#allocation11], %s734
          %736 = dma.done %s732, 64
        $region56: #{tpu_custom_call.1} parent=51 // pred_fallthru
          _
      $region52: #{tpu_custom_call.1} parent=5 // pred_fallthru
        _
    $region6: #{tpu_custom_call.1} parent=1 // loop_footer
      %s21 = sadd.s32 1, %s17
    $region7: #{tpu_custom_call.1} parent=1 // loop_footer_branch
      %16 = sbr.rel target = $region3
    $region8: #{tpu_custom_call.1} parent=1 // loop_exit
      _
    %737 = vsyncpa [#allocation7], 1
    %s738 = scalar_lea.sflag [#allocation7], 1
    %739 = vsyncpa %s738, 1
    %740 = vsyncpa [#allocation10], 1
    %s741 = scalar_lea.sflag [#allocation10], 1
    %742 = vsyncpa %s741, 1
    %743 = vsyncpa [#allocation8], 1
    %s744 = scalar_lea.sflag [#allocation8], 1
    %745 = vsyncpa %s744, 1

</llo_original>
